<compile_context>
chip_gen: v7x
topology: tpu7x:2x2x1
jax: 0.10.0
libtpu: 0.0.40
codegen_flags: <defaults>
</compile_context>

<pallas_src>
import functools

import jax
import jax.numpy as jnp
from jax.experimental import pallas as pl
from jax.experimental.pallas import tpu as pltpu

_LANES = 128
_DEFAULT_BLOCK_ROWS = 1024      # 1024 x 128 x 4B = 512 KiB per input block


def _round_up(x, m):
    return (x + m - 1) // m * m


def _loss_partial_sums_kernel(si_ref, x_ref, y_ref, out_ref, acc_ref):
    """Accumulate branch-specific partial sums over lane-dense (BR,128) tiles.

    si_ref  : SMEM int32[2]  = [mode (0=ce, 1=auc), n_valid_elements]
    x_ref   : VMEM f32[BR,128] logits tile
    y_ref   : VMEM f32[BR,128] labels tile
    out_ref : SMEM f32[1,7]  = [sum_bce, n_pos, n_neg,
                                sum_s*pos, sum_s*neg, sum_s^2*pos, sum_s^2*neg]
    acc_ref : VMEM f32[7,BR,128] running elementwise partial sums
    """
    pid = pl.program_id(0)

    @pl.when(pid == 0)
    def _init():
        acc_ref[...] = jnp.zeros_like(acc_ref)

    mode = si_ref[0]
    n = si_ref[1]

    x = x_ref[...]
    y = y_ref[...]
    br, lanes = x_ref.shape

    # Mask for the zero-padded tail (true element count is n).
    row = jax.lax.broadcasted_iota(jnp.int32, (br, lanes), 0)
    lane = jax.lax.broadcasted_iota(jnp.int32, (br, lanes), 1)
    rem = n - pid * (br * lanes)
    valid = ((row * lanes + lane) < rem).astype(jnp.float32)

    @pl.when(mode == 0)
    def _bce_partials():
        # binary_cross_entropy_with_logits, numerically stable form.
        elem = jnp.maximum(x, 0.0) - x * y + jnp.log1p(jnp.exp(-jnp.abs(x)))
        acc_ref[0] += elem * valid

    @pl.when(mode != 0)
    def _auc_partials():
        s = jax.nn.sigmoid(x)
        # Exact 0/1 label matching, same as the reference (1==y)/(0==y).
        pos = jnp.where(y == 1.0, valid, 0.0)
        neg = jnp.where(y == 0.0, valid, 0.0)
        s_pos = s * pos
        s_neg = s * neg
        acc_ref[1] += pos
        acc_ref[2] += neg
        acc_ref[3] += s_pos
        acc_ref[4] += s_neg
        acc_ref[5] += s * s_pos
        acc_ref[6] += s * s_neg

    @pl.when(pid == pl.num_programs(0) - 1)
    def _reduce_out():
        for k in range(7):
            out_ref[0, k] = jnp.sum(acc_ref[k])


@functools.partial(jax.jit, static_argnames=("block_rows",))
def _compositional_loss(y_pred, y_true, mode, use_given_p, a, b, alpha, p_given,
                        *, block_rows):
    # Inputs are expected as (N,) or (N,1), matching the reference module.
    x = y_pred.reshape(-1).astype(jnp.float32)
    y = y_true.reshape(-1).astype(jnp.float32)
    n = x.shape[0]

    rows = max(1, -(-n // _LANES))
    br = min(block_rows, _round_up(rows, 8))          # block rows, multiple of 8
    rows_p = _round_up(rows, br)
    pad = rows_p * _LANES - n
    xp = jnp.pad(x, (0, pad)).reshape(rows_p, _LANES)   # lane-dense layout
    yp = jnp.pad(y, (0, pad)).reshape(rows_p, _LANES)

    si = jnp.stack([jnp.asarray(mode, jnp.int32), jnp.asarray(n, jnp.int32)])

    sums = pl.pallas_call(
        _loss_partial_sums_kernel,
        out_shape=jax.ShapeDtypeStruct((1, 7), jnp.float32),
        grid_spec=pltpu.PrefetchScalarGridSpec(
            num_scalar_prefetch=1,
            grid=(rows_p // br,),
            in_specs=[
                pl.BlockSpec((br, _LANES), lambda i, s_ref: (i, 0)),
                pl.BlockSpec((br, _LANES), lambda i, s_ref: (i, 0)),
            ],
            out_specs=pl.BlockSpec((1, 7), lambda i, s_ref: (0, 0),
                                   memory_space=pltpu.MemorySpace.SMEM),
            scratch_shapes=[pltpu.VMEM((7, br, _LANES), jnp.float32)],
        ),
        compiler_params=pltpu.CompilerParams(
            dimension_semantics=("arbitrary",),
            vmem_limit_bytes=32 * 1024 * 1024,
        ),
    )(si, xp, yp)

    s = sums[0]
    inv_n = jnp.float32(1.0 / n)

    a = jnp.asarray(a, jnp.float32)
    b = jnp.asarray(b, jnp.float32)
    alpha = jnp.asarray(alpha, jnp.float32)
    p_given = jnp.asarray(p_given, jnp.float32)

    bce_loss = s[0] * inv_n

    n_pos, n_neg = s[1], s[2]
    s_pos, s_neg = s[3], s[4]
    s2_pos, s2_neg = s[5], s[6]
    p = jnp.where(use_given_p != 0, p_given, n_pos * inv_n)
    # mean((sigmoid - a)^2 * pos) etc., expanded so the streamed sums are
    # independent of a, b, alpha and p (single pass over HBM).
    mean_sq_a = (s2_pos - 2.0 * a * s_pos + a * a * n_pos) * inv_n
    mean_sq_b = (s2_neg - 2.0 * b * s_neg + b * b * n_neg) * inv_n
    # TODO(synk): the reference forward never applies self.margin; mirrored here.
    auc_loss = ((1.0 - p) * mean_sq_a + p * mean_sq_b
                + 2.0 * alpha * (p * (1.0 - p)
                                 + (p * s_neg - (1.0 - p) * s_pos) * inv_n)
                - p * (1.0 - p) * alpha * alpha)

    loss = jnp.where(jnp.asarray(mode, jnp.int32) == 0, bce_loss, auc_loss)
    return loss, p


class CompositionalAUCLossV1:
    """JAX/Pallas port of CompositionalAUCLoss_V1 (forward pass only).

    Mirrors the PyTorch module's call-alternating behaviour: the first call
    evaluates the CE branch, the second the AUC branch, and so on.  The
    learnable scalars a, b, alpha are zero-initialized as in __init__.
    """

    def __init__(self, imratio=None, margin=1, backend="ce", device=None,
                 block_rows=_DEFAULT_BLOCK_ROWS):
        del backend, device          # reference forces backend='ce'; device is a no-op
        self.margin = margin         # stored but unused, same as the reference forward
        self.p = imratio
        self.a = jnp.zeros((), jnp.float32)
        self.b = jnp.zeros((), jnp.float32)
        self.alpha = jnp.zeros((), jnp.float32)
        self.block_rows = max(8, _round_up(int(block_rows), 8))
        self.backend = "ce"

    def __call__(self, y_pred, y_true, auto=True):
        y_pred = jnp.asarray(y_pred)
        y_true = jnp.asarray(y_true)
        if y_pred.ndim == 1:
            y_pred = y_pred.reshape(-1, 1)
        if y_true.ndim == 1:
            y_true = y_true.reshape(-1, 1)

        if self.backend == "ce":
            self.backend = "auc"
            mode, use_given_p, p_given = 0, 0, 0.0
        else:
            self.backend = "ce"
            mode = 1
            if auto or not self.p:               # same condition as the reference
                use_given_p, p_given = 0, 0.0
            else:
                use_given_p, p_given = 1, self.p

        loss, p_out = _compositional_loss(
            y_pred, y_true,
            jnp.asarray(mode, jnp.int32),
            jnp.asarray(use_given_p, jnp.int32),
            self.a, self.b, self.alpha,
            jnp.asarray(p_given, jnp.float32),
            block_rows=self.block_rows)

        if mode == 1 and use_given_p == 0:
            self.p = p_out                       # mirror the reference's self.p update
        return loss

    forward = __call__


# ----------------------------------------------------------------------------
# Pure-JAX references for verification.
# ----------------------------------------------------------------------------
def _ref_bce(y_pred, y_true):
    x = jnp.asarray(y_pred, jnp.float32).reshape(-1)
    y = jnp.asarray(y_true, jnp.float32).reshape(-1)
    return jnp.mean(jnp.maximum(x, 0.0) - x * y + jnp.log1p(jnp.exp(-jnp.abs(x))))


def _ref_auc(y_pred, y_true, a=0.0, b=0.0, alpha=0.0, p=None):
    x = jnp.asarray(y_pred, jnp.float32).reshape(-1)
    y = jnp.asarray(y_true, jnp.float32).reshape(-1)
    pos = (y == 1.0).astype(jnp.float32)
    neg = (y == 0.0).astype(jnp.float32)
    if p is None:
        p = jnp.mean(pos)
    s = jax.nn.sigmoid(x)
    return ((1.0 - p) * jnp.mean((s - a) ** 2 * pos)
            + p * jnp.mean((s - b) ** 2 * neg)
            + 2.0 * alpha * (p * (1.0 - p) + jnp.mean(p * s * neg - (1.0 - p) * s * pos))
            - p * (1.0 - p) * alpha ** 2)


if __name__ == "__main__":
    key = jax.random.PRNGKey(0)
    k1, k2, k3, k4 = jax.random.split(key, 4)

    # Case 1: small batch, single grid step.
    n1 = 128
    yp1 = jax.random.normal(k1, (n1, 1), dtype=jnp.float32)
    yt1 = jax.random.bernoulli(k2, p=0.25, shape=(n1, 1)).astype(jnp.float32)
    loss_fn = CompositionalAUCLossV1(margin=1)
    ce1 = loss_fn(yp1, yt1)         # 1st call -> CE branch
    auc1 = loss_fn(yp1, yt1)        # 2nd call -> AUC branch (auto p)
    jax.block_until_ready((ce1, auc1))
    assert jnp.allclose(ce1, _ref_bce(yp1, yt1), rtol=1e-5, atol=1e-5)
    assert jnp.allclose(auc1, _ref_auc(yp1, yt1), rtol=1e-5, atol=1e-5)

    # Case 2: non-multiple-of-128 batch with a tiny block size so the tiled,
    # multi-step accumulation path (grid > 1 + pad masking) is exercised.
    n2 = 2085
    yp2 = jax.random.normal(k3, (n2,), dtype=jnp.float32)
    yt2 = jax.random.bernoulli(k4, p=0.1, shape=(n2,)).astype(jnp.float32)
    loss_fn2 = CompositionalAUCLossV1(block_rows=8)
    ce2 = loss_fn2(yp2, yt2)
    auc2 = loss_fn2(yp2, yt2)
    jax.block_until_ready((ce2, auc2))
    assert jnp.allclose(ce2, _ref_bce(yp2, yt2), rtol=1e-5, atol=1e-5)
    assert jnp.allclose(auc2, _ref_auc(yp2, yt2), rtol=1e-5, atol=1e-5)

    # Case 3: user-supplied imratio with auto=False uses the given p.
    loss_fn3 = CompositionalAUCLossV1(imratio=0.3)
    _ = loss_fn3(yp1, yt1)                       # CE branch
    auc3 = loss_fn3(yp1, yt1, auto=False)        # AUC branch with p = 0.3
    jax.block_until_ready(auc3)
    assert jnp.allclose(auc3, _ref_auc(yp1, yt1, p=0.3), rtol=1e-5, atol=1e-5)

    print("KERNEL_OK")
</pallas_src>

<mosaic_0001>
module attributes {stable_mosaic.version = 11 : i64} {
  func.func @_loss_partial_sums_kernel(%arg0: i32, %arg1: memref<2xi32, #tpu.memory_space<smem>>, %arg2: memref<8x128xf32, #tpu.memory_space<vmem>>, %arg3: memref<8x128xf32, #tpu.memory_space<vmem>>, %arg4: memref<1x7xf32, #tpu.memory_space<smem>>, %arg5: memref<7x8x128xf32, #tpu.memory_space<vmem>>) attributes {dimension_semantics = [#tpu.dimension_semantics<arbitrary>], iteration_bounds = array<i64: 1>, scalar_prefetch = 1 : i64, scratch_operands = 1 : i64, tpu.core_type = #tpu.core_type<tc>, window_params = [{transform_indices = @transform_0, window_bounds = array<i64: 8, 128>}, {transform_indices = @transform_1, window_bounds = array<i64: 8, 128>}, {transform_indices = @transform_2, window_bounds = array<i64: 1, 7>}]} {
    %c0_i32 = arith.constant 0 : i32
    %0 = arith.cmpi eq, %arg0, %c0_i32 : i32
    %1 = arith.extui %0 : i1 to i32
    %c0_i32_0 = arith.constant 0 : i32
    %2 = arith.cmpi ne, %1, %c0_i32_0 : i32
    scf.if %2 {
      %cst = arith.constant 0.000000e+00 : f32
      %27 = vector.broadcast %cst : f32 to vector<7x8x128xf32>
      %c0_11 = arith.constant 0 : index
      %c0_12 = arith.constant 0 : index
      %c0_13 = arith.constant 0 : index
      %28 = vector.load %arg5[%c0_11, %c0_12, %c0_13] : memref<7x8x128xf32, #tpu.memory_space<vmem>>, vector<7x8x128xf32>
      tpu.vector_store %arg5[%c0_11, %c0_12, %c0_13], %27 {strides = array<i32>} : memref<7x8x128xf32, #tpu.memory_space<vmem>>, vector<7x8x128xf32>,
    } else {
    }
    %c0 = arith.constant 0 : index
    %3 = memref.load %arg1[%c0] : memref<2xi32, #tpu.memory_space<smem>>
    %c1 = arith.constant 1 : index
    %4 = memref.load %arg1[%c1] : memref<2xi32, #tpu.memory_space<smem>>
    %c0_1 = arith.constant 0 : index
    %c0_2 = arith.constant 0 : index
    %5 = vector.load %arg2[%c0_1, %c0_2] : memref<8x128xf32, #tpu.memory_space<vmem>>, vector<8x128xf32>
    %c0_3 = arith.constant 0 : index
    %c0_4 = arith.constant 0 : index
    %6 = vector.load %arg3[%c0_3, %c0_4] : memref<8x128xf32, #tpu.memory_space<vmem>>, vector<8x128xf32>
    %7 = tpu.iota {dimensions = array<i32: 0>} : vector<8x128xi32>
    %8 = tpu.iota {dimensions = array<i32: 1>} : vector<8x128xi32>
    %c1024_i32 = arith.constant 1024 : i32
    %9 = arith.muli %arg0, %c1024_i32 : i32
    %10 = arith.subi %4, %9 : i32
    %c128_i32 = arith.constant 128 : i32
    %11 = vector.broadcast %c128_i32 : i32 to vector<8x128xi32>
    %12 = arith.muli %7, %11 : vector<8x128xi32>
    %13 = arith.addi %12, %8 : vector<8x128xi32>
    %14 = vector.broadcast %10 : i32 to vector<8x128xi32>
    %15 = arith.cmpi slt, %13, %14 : vector<8x128xi32>
    %16 = arith.extui %15 : vector<8x128xi1> to vector<8x128xi32>
    %17 = arith.sitofp %16 : vector<8x128xi32> to vector<8x128xf32>
    %c0_i32_5 = arith.constant 0 : i32
    %18 = arith.cmpi eq, %3, %c0_i32_5 : i32
    %19 = arith.extui %18 : i1 to i32
    %c0_i32_6 = arith.constant 0 : i32
    %20 = arith.cmpi ne, %19, %c0_i32_6 : i32
    scf.if %20 {
      %cst = arith.constant 0.000000e+00 : f32
      %27 = vector.broadcast %cst : f32 to vector<8x128xf32>
      %28 = arith.maximumf %5, %27 : vector<8x128xf32>
      %29 = arith.mulf %5, %6 : vector<8x128xf32>
      %30 = arith.subf %28, %29 : vector<8x128xf32>
      %31 = math.absf %5 : vector<8x128xf32>
      %cst_11 = arith.constant 0.000000e+00 : f32
      %32 = vector.broadcast %cst_11 : f32 to vector<8x128xf32>
      %33 = arith.subf %32, %31 : vector<8x128xf32>
      %34 = math.exp %33 : vector<8x128xf32>
      %35 = math.log1p %34 : vector<8x128xf32>
      %36 = arith.addf %30, %35 : vector<8x128xf32>
      %c0_12 = arith.constant 0 : index
      %c0_13 = arith.constant 0 : index
      %c0_14 = arith.constant 0 : index
      %37 = vector.load %arg5[%c0_12, %c0_13, %c0_14] : memref<7x8x128xf32, #tpu.memory_space<vmem>>, vector<1x8x128xf32>
      %38 = vector.shape_cast %37 : vector<1x8x128xf32> to vector<8x128xf32>
      %39 = arith.mulf %36, %17 : vector<8x128xf32>
      %40 = arith.addf %38, %39 : vector<8x128xf32>
      %c0_15 = arith.constant 0 : index
      %c0_16 = arith.constant 0 : index
      %c0_17 = arith.constant 0 : index
      %41 = vector.load %arg5[%c0_15, %c0_16, %c0_17] : memref<7x8x128xf32, #tpu.memory_space<vmem>>, vector<1x8x128xf32>
      %42 = vector.shape_cast %41 : vector<1x8x128xf32> to vector<8x128xf32>
      %43 = vector.shape_cast %40 : vector<8x128xf32> to vector<1x8x128xf32>
      tpu.vector_store %arg5[%c0_15, %c0_16, %c0_17], %43 {strides = array<i32>} : memref<7x8x128xf32, #tpu.memory_space<vmem>>, vector<1x8x128xf32>,
    } else {
    }
    %c0_i32_7 = arith.constant 0 : i32
    %21 = arith.cmpi ne, %3, %c0_i32_7 : i32
    %22 = arith.extui %21 : i1 to i32
    %c0_i32_8 = arith.constant 0 : i32
    %23 = arith.cmpi ne, %22, %c0_i32_8 : i32
    scf.if %23 {
      %27 = arith.negf %5 : vector<8x128xf32>
      %28 = math.exp %27 : vector<8x128xf32>
      %cst = arith.constant 1.000000e+00 : f32
      %29 = vector.broadcast %cst : f32 to vector<8x128xf32>
      %30 = arith.addf %29, %28 : vector<8x128xf32>
      %31 = arith.divf %29, %30 : vector<8x128xf32>
      %cst_11 = arith.constant 1.000000e+00 : f32
      %32 = vector.broadcast %cst_11 : f32 to vector<8x128xf32>
      %33 = arith.cmpf oeq, %6, %32 : vector<8x128xf32>
      %cst_12 = arith.constant 0.000000e+00 : f32
      %34 = vector.broadcast %cst_12 : f32 to vector<8x128xf32>
      %35 = arith.select %33, %17, %34 : vector<8x128xi1>, vector<8x128xf32>
      %cst_13 = arith.constant 0.000000e+00 : f32
      %36 = vector.broadcast %cst_13 : f32 to vector<8x128xf32>
      %37 = arith.cmpf oeq, %6, %36 : vector<8x128xf32>
      %cst_14 = arith.constant 0.000000e+00 : f32
      %38 = vector.broadcast %cst_14 : f32 to vector<8x128xf32>
      %39 = arith.select %37, %17, %38 : vector<8x128xi1>, vector<8x128xf32>
      %40 = arith.mulf %31, %35 : vector<8x128xf32>
      %41 = arith.mulf %31, %39 : vector<8x128xf32>
      %c1_15 = arith.constant 1 : index
      %c0_16 = arith.constant 0 : index
      %c0_17 = arith.constant 0 : index
      %42 = vector.load %arg5[%c1_15, %c0_16, %c0_17] : memref<7x8x128xf32, #tpu.memory_space<vmem>>, vector<1x8x128xf32>
      %43 = vector.shape_cast %42 : vector<1x8x128xf32> to vector<8x128xf32>
      %44 = arith.addf %43, %35 : vector<8x128xf32>
      %c1_18 = arith.constant 1 : index
      %c0_19 = arith.constant 0 : index
      %c0_20 = arith.constant 0 : index
      %45 = vector.load %arg5[%c1_18, %c0_19, %c0_20] : memref<7x8x128xf32, #tpu.memory_space<vmem>>, vector<1x8x128xf32>
      %46 = vector.shape_cast %45 : vector<1x8x128xf32> to vector<8x128xf32>
      %47 = vector.shape_cast %44 : vector<8x128xf32> to vector<1x8x128xf32>
      tpu.vector_store %arg5[%c1_18, %c0_19, %c0_20], %47 {strides = array<i32>} : memref<7x8x128xf32, #tpu.memory_space<vmem>>, vector<1x8x128xf32>,
      %c2 = arith.constant 2 : index
      %c0_21 = arith.constant 0 : index
      %c0_22 = arith.constant 0 : index
      %48 = vector.load %arg5[%c2, %c0_21, %c0_22] : memref<7x8x128xf32, #tpu.memory_space<vmem>>, vector<1x8x128xf32>
      %49 = vector.shape_cast %48 : vector<1x8x128xf32> to vector<8x128xf32>
      %50 = arith.addf %49, %39 : vector<8x128xf32>
      %c2_23 = arith.constant 2 : index
      %c0_24 = arith.constant 0 : index
      %c0_25 = arith.constant 0 : index
      %51 = vector.load %arg5[%c2_23, %c0_24, %c0_25] : memref<7x8x128xf32, #tpu.memory_space<vmem>>, vector<1x8x128xf32>
      %52 = vector.shape_cast %51 : vector<1x8x128xf32> to vector<8x128xf32>
      %53 = vector.shape_cast %50 : vector<8x128xf32> to vector<1x8x128xf32>
      tpu.vector_store %arg5[%c2_23, %c0_24, %c0_25], %53 {strides = array<i32>} : memref<7x8x128xf32, #tpu.memory_space<vmem>>, vector<1x8x128xf32>,
      %c3 = arith.constant 3 : index
      %c0_26 = arith.constant 0 : index
      %c0_27 = arith.constant 0 : index
      %54 = vector.load %arg5[%c3, %c0_26, %c0_27] : memref<7x8x128xf32, #tpu.memory_space<vmem>>, vector<1x8x128xf32>
      %55 = vector.shape_cast %54 : vector<1x8x128xf32> to vector<8x128xf32>
      %56 = arith.addf %55, %40 : vector<8x128xf32>
      %c3_28 = arith.constant 3 : index
      %c0_29 = arith.constant 0 : index
      %c0_30 = arith.constant 0 : index
      %57 = vector.load %arg5[%c3_28, %c0_29, %c0_30] : memref<7x8x128xf32, #tpu.memory_space<vmem>>, vector<1x8x128xf32>
      %58 = vector.shape_cast %57 : vector<1x8x128xf32> to vector<8x128xf32>
      %59 = vector.shape_cast %56 : vector<8x128xf32> to vector<1x8x128xf32>
      tpu.vector_store %arg5[%c3_28, %c0_29, %c0_30], %59 {strides = array<i32>} : memref<7x8x128xf32, #tpu.memory_space<vmem>>, vector<1x8x128xf32>,
      %c4 = arith.constant 4 : index
      %c0_31 = arith.constant 0 : index
      %c0_32 = arith.constant 0 : index
      %60 = vector.load %arg5[%c4, %c0_31, %c0_32] : memref<7x8x128xf32, #tpu.memory_space<vmem>>, vector<1x8x128xf32>
      %61 = vector.shape_cast %60 : vector<1x8x128xf32> to vector<8x128xf32>
      %62 = arith.addf %61, %41 : vector<8x128xf32>
      %c4_33 = arith.constant 4 : index
      %c0_34 = arith.constant 0 : index
      %c0_35 = arith.constant 0 : index
      %63 = vector.load %arg5[%c4_33, %c0_34, %c0_35] : memref<7x8x128xf32, #tpu.memory_space<vmem>>, vector<1x8x128xf32>
      %64 = vector.shape_cast %63 : vector<1x8x128xf32> to vector<8x128xf32>
      %65 = vector.shape_cast %62 : vector<8x128xf32> to vector<1x8x128xf32>
      tpu.vector_store %arg5[%c4_33, %c0_34, %c0_35], %65 {strides = array<i32>} : memref<7x8x128xf32, #tpu.memory_space<vmem>>, vector<1x8x128xf32>,
      %c5 = arith.constant 5 : index
      %c0_36 = arith.constant 0 : index
      %c0_37 = arith.constant 0 : index
      %66 = vector.load %arg5[%c5, %c0_36, %c0_37] : memref<7x8x128xf32, #tpu.memory_space<vmem>>, vector<1x8x128xf32>
      %67 = vector.shape_cast %66 : vector<1x8x128xf32> to vector<8x128xf32>
      %68 = arith.mulf %31, %40 : vector<8x128xf32>
      %69 = arith.addf %67, %68 : vector<8x128xf32>
      %c5_38 = arith.constant 5 : index
      %c0_39 = arith.constant 0 : index
      %c0_40 = arith.constant 0 : index
      %70 = vector.load %arg5[%c5_38, %c0_39, %c0_40] : memref<7x8x128xf32, #tpu.memory_space<vmem>>, vector<1x8x128xf32>
      %71 = vector.shape_cast %70 : vector<1x8x128xf32> to vector<8x128xf32>
      %72 = vector.shape_cast %69 : vector<8x128xf32> to vector<1x8x128xf32>
      tpu.vector_store %arg5[%c5_38, %c0_39, %c0_40], %72 {strides = array<i32>} : memref<7x8x128xf32, #tpu.memory_space<vmem>>, vector<1x8x128xf32>,
      %c6 = arith.constant 6 : index
      %c0_41 = arith.constant 0 : index
      %c0_42 = arith.constant 0 : index
      %73 = vector.load %arg5[%c6, %c0_41, %c0_42] : memref<7x8x128xf32, #tpu.memory_space<vmem>>, vector<1x8x128xf32>
      %74 = vector.shape_cast %73 : vector<1x8x128xf32> to vector<8x128xf32>
      %75 = arith.mulf %31, %41 : vector<8x128xf32>
      %76 = arith.addf %74, %75 : vector<8x128xf32>
      %c6_43 = arith.constant 6 : index
      %c0_44 = arith.constant 0 : index
      %c0_45 = arith.constant 0 : index
      %77 = vector.load %arg5[%c6_43, %c0_44, %c0_45] : memref<7x8x128xf32, #tpu.memory_space<vmem>>, vector<1x8x128xf32>
      %78 = vector.shape_cast %77 : vector<1x8x128xf32> to vector<8x128xf32>
      %79 = vector.shape_cast %76 : vector<8x128xf32> to vector<1x8x128xf32>
      tpu.vector_store %arg5[%c6_43, %c0_44, %c0_45], %79 {strides = array<i32>} : memref<7x8x128xf32, #tpu.memory_space<vmem>>, vector<1x8x128xf32>,
    } else {
    }
    %c0_i32_9 = arith.constant 0 : i32
    %24 = arith.cmpi eq, %arg0, %c0_i32_9 : i32
    %25 = arith.extui %24 : i1 to i32
    %c0_i32_10 = arith.constant 0 : i32
    %26 = arith.cmpi ne, %25, %c0_i32_10 : i32
    scf.if %26 {
      %c0_11 = arith.constant 0 : index
      %c0_12 = arith.constant 0 : index
      %c0_13 = arith.constant 0 : index
      %27 = vector.load %arg5[%c0_11, %c0_12, %c0_13] : memref<7x8x128xf32, #tpu.memory_space<vmem>>, vector<1x8x128xf32>
      %28 = vector.shape_cast %27 : vector<1x8x128xf32> to vector<8x128xf32>
      %29 = vector.shape_cast %28 : vector<8x128xf32> to vector<1x8x128xf32>
      %cst = arith.constant dense<0.000000e+00> : vector<1xf32>
      %30 = vector.multi_reduction <add>, %29, %cst [1, 2] : vector<1x8x128xf32> to vector<1xf32>
      %31 = vector.shape_cast %30 : vector<1xf32> to vector<1x1x1xf32>
      %32 = vector.extract %31[0, 0, 0] : f32 from vector<1x1x1xf32>
      %c0_14 = arith.constant 0 : index
      %c0_15 = arith.constant 0 : index
      %33 = memref.load %arg4[%c0_14, %c0_15] : memref<1x7xf32, #tpu.memory_space<smem>>
      memref.store %32, %arg4[%c0_14, %c0_15] : memref<1x7xf32, #tpu.memory_space<smem>>
      %c1_16 = arith.constant 1 : index
      %c0_17 = arith.constant 0 : index
      %c0_18 = arith.constant 0 : index
      %34 = vector.load %arg5[%c1_16, %c0_17, %c0_18] : memref<7x8x128xf32, #tpu.memory_space<vmem>>, vector<1x8x128xf32>
      %35 = vector.shape_cast %34 : vector<1x8x128xf32> to vector<8x128xf32>
      %36 = vector.shape_cast %35 : vector<8x128xf32> to vector<1x8x128xf32>
      %cst_19 = arith.constant dense<0.000000e+00> : vector<1xf32>
      %37 = vector.multi_reduction <add>, %36, %cst_19 [1, 2] : vector<1x8x128xf32> to vector<1xf32>
      %38 = vector.shape_cast %37 : vector<1xf32> to vector<1x1x1xf32>
      %39 = vector.extract %38[0, 0, 0] : f32 from vector<1x1x1xf32>
      %c0_20 = arith.constant 0 : index
      %c1_21 = arith.constant 1 : index
      %40 = memref.load %arg4[%c0_20, %c1_21] : memref<1x7xf32, #tpu.memory_space<smem>>
      memref.store %39, %arg4[%c0_20, %c1_21] : memref<1x7xf32, #tpu.memory_space<smem>>
      %c2 = arith.constant 2 : index
      %c0_22 = arith.constant 0 : index
      %c0_23 = arith.constant 0 : index
      %41 = vector.load %arg5[%c2, %c0_22, %c0_23] : memref<7x8x128xf32, #tpu.memory_space<vmem>>, vector<1x8x128xf32>
      %42 = vector.shape_cast %41 : vector<1x8x128xf32> to vector<8x128xf32>
      %43 = vector.shape_cast %42 : vector<8x128xf32> to vector<1x8x128xf32>
      %cst_24 = arith.constant dense<0.000000e+00> : vector<1xf32>
      %44 = vector.multi_reduction <add>, %43, %cst_24 [1, 2] : vector<1x8x128xf32> to vector<1xf32>
      %45 = vector.shape_cast %44 : vector<1xf32> to vector<1x1x1xf32>
      %46 = vector.extract %45[0, 0, 0] : f32 from vector<1x1x1xf32>
      %c0_25 = arith.constant 0 : index
      %c2_26 = arith.constant 2 : index
      %47 = memref.load %arg4[%c0_25, %c2_26] : memref<1x7xf32, #tpu.memory_space<smem>>
      memref.store %46, %arg4[%c0_25, %c2_26] : memref<1x7xf32, #tpu.memory_space<smem>>
      %c3 = arith.constant 3 : index
      %c0_27 = arith.constant 0 : index
      %c0_28 = arith.constant 0 : index
      %48 = vector.load %arg5[%c3, %c0_27, %c0_28] : memref<7x8x128xf32, #tpu.memory_space<vmem>>, vector<1x8x128xf32>
      %49 = vector.shape_cast %48 : vector<1x8x128xf32> to vector<8x128xf32>
      %50 = vector.shape_cast %49 : vector<8x128xf32> to vector<1x8x128xf32>
      %cst_29 = arith.constant dense<0.000000e+00> : vector<1xf32>
      %51 = vector.multi_reduction <add>, %50, %cst_29 [1, 2] : vector<1x8x128xf32> to vector<1xf32>
      %52 = vector.shape_cast %51 : vector<1xf32> to vector<1x1x1xf32>
      %53 = vector.extract %52[0, 0, 0] : f32 from vector<1x1x1xf32>
      %c0_30 = arith.constant 0 : index
      %c3_31 = arith.constant 3 : index
      %54 = memref.load %arg4[%c0_30, %c3_31] : memref<1x7xf32, #tpu.memory_space<smem>>
      memref.store %53, %arg4[%c0_30, %c3_31] : memref<1x7xf32, #tpu.memory_space<smem>>
      %c4 = arith.constant 4 : index
      %c0_32 = arith.constant 0 : index
      %c0_33 = arith.constant 0 : index
      %55 = vector.load %arg5[%c4, %c0_32, %c0_33] : memref<7x8x128xf32, #tpu.memory_space<vmem>>, vector<1x8x128xf32>
      %56 = vector.shape_cast %55 : vector<1x8x128xf32> to vector<8x128xf32>
      %57 = vector.shape_cast %56 : vector<8x128xf32> to vector<1x8x128xf32>
      %cst_34 = arith.constant dense<0.000000e+00> : vector<1xf32>
      %58 = vector.multi_reduction <add>, %57, %cst_34 [1, 2] : vector<1x8x128xf32> to vector<1xf32>
      %59 = vector.shape_cast %58 : vector<1xf32> to vector<1x1x1xf32>
      %60 = vector.extract %59[0, 0, 0] : f32 from vector<1x1x1xf32>
      %c0_35 = arith.constant 0 : index
      %c4_36 = arith.constant 4 : index
      %61 = memref.load %arg4[%c0_35, %c4_36] : memref<1x7xf32, #tpu.memory_space<smem>>
      memref.store %60, %arg4[%c0_35, %c4_36] : memref<1x7xf32, #tpu.memory_space<smem>>
      %c5 = arith.constant 5 : index
      %c0_37 = arith.constant 0 : index
      %c0_38 = arith.constant 0 : index
      %62 = vector.load %arg5[%c5, %c0_37, %c0_38] : memref<7x8x128xf32, #tpu.memory_space<vmem>>, vector<1x8x128xf32>
      %63 = vector.shape_cast %62 : vector<1x8x128xf32> to vector<8x128xf32>
      %64 = vector.shape_cast %63 : vector<8x128xf32> to vector<1x8x128xf32>
      %cst_39 = arith.constant dense<0.000000e+00> : vector<1xf32>
      %65 = vector.multi_reduction <add>, %64, %cst_39 [1, 2] : vector<1x8x128xf32> to vector<1xf32>
      %66 = vector.shape_cast %65 : vector<1xf32> to vector<1x1x1xf32>
      %67 = vector.extract %66[0, 0, 0] : f32 from vector<1x1x1xf32>
      %c0_40 = arith.constant 0 : index
      %c5_41 = arith.constant 5 : index
      %68 = memref.load %arg4[%c0_40, %c5_41] : memref<1x7xf32, #tpu.memory_space<smem>>
      memref.store %67, %arg4[%c0_40, %c5_41] : memref<1x7xf32, #tpu.memory_space<smem>>
      %c6 = arith.constant 6 : index
      %c0_42 = arith.constant 0 : index
      %c0_43 = arith.constant 0 : index
      %69 = vector.load %arg5[%c6, %c0_42, %c0_43] : memref<7x8x128xf32, #tpu.memory_space<vmem>>, vector<1x8x128xf32>
      %70 = vector.shape_cast %69 : vector<1x8x128xf32> to vector<8x128xf32>
      %71 = vector.shape_cast %70 : vector<8x128xf32> to vector<1x8x128xf32>
      %cst_44 = arith.constant dense<0.000000e+00> : vector<1xf32>
      %72 = vector.multi_reduction <add>, %71, %cst_44 [1, 2] : vector<1x8x128xf32> to vector<1xf32>
      %73 = vector.shape_cast %72 : vector<1xf32> to vector<1x1x1xf32>
      %74 = vector.extract %73[0, 0, 0] : f32 from vector<1x1x1xf32>
      %c0_45 = arith.constant 0 : index
      %c6_46 = arith.constant 6 : index
      %75 = memref.load %arg4[%c0_45, %c6_46] : memref<1x7xf32, #tpu.memory_space<smem>>
      memref.store %74, %arg4[%c0_45, %c6_46] : memref<1x7xf32, #tpu.memory_space<smem>>
    } else {
    }
    return
  }
  func.func @transform_0(%arg0: i32, %arg1: memref<2xi32, #tpu.memory_space<smem>>) -> (i32, i32) {
    %c0_i32 = arith.constant 0 : i32
    %c0_i32_0 = arith.constant 0 : i32
    return %arg0, %c0_i32 : i32, i32
  }
  func.func @transform_1(%arg0: i32, %arg1: memref<2xi32, #tpu.memory_space<smem>>) -> (i32, i32) {
    %c0_i32 = arith.constant 0 : i32
    %c0_i32_0 = arith.constant 0 : i32
    return %arg0, %c0_i32 : i32, i32
  }
  func.func @transform_2(%arg0: i32, %arg1: memref<2xi32, #tpu.memory_space<smem>>) -> (i32, i32) {
    %c0_i32 = arith.constant 0 : i32
    %c0_i32_0 = arith.constant 0 : i32
    %c0_i32_1 = arith.constant 0 : i32
    return %c0_i32, %c0_i32_0 : i32, i32
  }
}

</mosaic_0001>

<llo_original>
// kernel: _compositional_loss.1
$region0: #{_compositional_loss.1}
  #allocation0 [shape = 'u32[]', space=smem, size = 0x4, offset = 0x4, fixed_abs, tag = 'smem constant byte address 0x4 - core index']
  #allocation1 [shape = 'u32[144,128]{1,0:T(1,128)}', space=vmem, size = 0x12000, scoped, tag = 'internal scratch']
  #allocation2 [shape = 'f32[7,8,128]{2,1,0:T(8,128)}', space=vmem, size = 0x7000, scoped, tag = 'scratch operand']
  #allocation3 [shape = 's32[1]{0}', space=sflag, size = 0x4, scoped, tag = 'scoped memory for _compositional_loss.1']
  #allocation4 [shape = 'u8[512]{0}', space=smem, size = 0x200, scoped, tag = 'prefetched SMEM operand 0']
  %s0 = inlined_call_operand.vmem [shape: s32[2], index: 0, kind: input, shape index: {}]
  %s1 = inlined_call_operand.vmem [shape: f32[8,128], index: 1, kind: input, shape index: {}]
  %s2 = inlined_call_operand.vmem [shape: f32[8,128], index: 2, kind: input, shape index: {}]
  %s3 = inlined_call_operand.vmem [shape: f32[1,7], index: 3, kind: output, shape index: {}]
  %s4 = sld [smem:[#allocation0]]
  $region34: #{_compositional_loss.1} parent=0
    _
  %s6 = ssub.s32 1, %s4
  %s7 = scalar_select 0, %s6, %s4
  %s8 = sshll.u32 %s0, 4
  %s9 = int_to_ptr.vmem [resolvable:$true] %s8
  %11 = dma.vmem_to_smem %s9, 16, [#allocation4], [#allocation3]
  %12 = dma.done [#allocation3], 16
  %13 = sfence
  $region1: #{_compositional_loss.1} parent=0
    #allocation5 [shape = 'u8[512]{0}', space=smem, size = 0x200, scoped, tag = 'output window, operand 0, single buffered']
    #allocation6 [shape = 's32[1]{0}', space=sflag, size = 0x4, scoped, tag = 'scoped memory for _compositional_loss.1']
    %14 = vsyncpa [#allocation6], 0
    // Predicated region
    $region2: #{_compositional_loss.1} parent=1 // pred_check
      _
    $region3: #{_compositional_loss.1} parent=1 // pred_check_branch
      %16 = sbr.rel (0) target = $region5
    $region4: #{_compositional_loss.1} parent=1 // pred_region
      _
    $region5: #{_compositional_loss.1} parent=1 // pred_fallthru
      _
    // Predicated region
    $region6: #{_compositional_loss.1} parent=1 // pred_check
      _
    $region7: #{_compositional_loss.1} parent=1 // pred_check_branch
      %18 = sbr.rel (0) target = $region9
    $region8: #{_compositional_loss.1} parent=1 // pred_region
      _
    $region9: #{_compositional_loss.1} parent=1 // pred_fallthru
      _
    %p19 = scmp.eq.s32.totalorder 0, 0
    // Predicated region
    $region10: #{_compositional_loss.1} parent=1 // pred_check
      %p20 = pneg %p19
    $region11: #{_compositional_loss.1} parent=1 // pred_check_branch
      %22 = sbr.rel (%p20) target = $region13
    $region12: #{_compositional_loss.1} parent=1 // pred_region
      %23 = vst [vmem:[#allocation2] sm:$0xff] 0.0
      %24 = vst [vmem:[#allocation2 + $0x8] sm:$0xff] 0.0
      %25 = vst [vmem:[#allocation2 + $0x10] sm:$0xff] 0.0
      %26 = vst [vmem:[#allocation2 + $0x18] sm:$0xff] 0.0
      %27 = vst [vmem:[#allocation2 + $0x20] sm:$0xff] 0.0
      %28 = vst [vmem:[#allocation2 + $0x28] sm:$0xff] 0.0
      %29 = vst [vmem:[#allocation2 + $0x30] sm:$0xff] 0.0
    $region13: #{_compositional_loss.1} parent=1 // pred_fallthru
      _
    %s30 = sld [smem:[#allocation4]]
    %s31 = sld [smem:[#allocation4 + $0x1]]
    %v32 = vld [vmem:[%s1] sm:$0xff]
    %v33 = vld [vmem:[%s2] sm:$0xff]
    %v34 = vlaneseq
    %v35 = vshrl.u32 %v34, 7
    %v36 = vlaneseq
    %v37 = vand.u32 %v36, 127
    %s38 = smul.u32 0, 1024
    %s39 = ssub.s32 %s31, %s38
    %v40 = vmul.u32 %v35, 128
    %v41 = vadd.s32 %v40, %v37
    %v42 = vstv %s39
    %vm43 = vcmp.lt.s32.totalorder %v41, %v42
    %v44 = vsel %vm43, 1, 0
    %v45 = vcvt.s32.f32 %v44
    %p46 = scmp.eq.s32.totalorder %s30, 0
    // Predicated region
    $region14: #{_compositional_loss.1} parent=1 // pred_check
      %p47 = pneg %p46
    $region15: #{_compositional_loss.1} parent=1 // pred_check_branch
      %49 = sbr.rel (%p47) target = $region17
    $region16: #{_compositional_loss.1} parent=1 // pred_region
      %v50 = vmax.f32 %v32, 0.0
      %v51 = vmul.f32 %v32, %v33
      %v52 = vsub.f32 %v50, %v51
      %v53 = vand.u32 2147483647, %v32
      %v54 = vsub.f32 0.0, %v53
      %v55 = vmul.f32 %v54, 1.442695
      %v56 = vpow.pop %v55
      %v57 = vadd.f32 %v56, 1.0
      %v58 = vlog2.pop %v57
      %v59 = vmul.f32 %v58, 0.6931472
      %v60 = vmul.f32 -0.5, %v56
      %v61 = vadd.f32 %v60, 1.0
      %v62 = vmul.f32 %v61, %v56
      %v63 = vand.u32 2147483647, %v56
      %vm64 = vcmp.lt.f32.partialorder %v63, 0.0004427343
      %v65 = vsel %vm64, %v62, %v59
      %v66 = vadd.f32 %v52, %v65
      %v67 = vld [vmem:[#allocation2] sm:$0xff]
      %v68 = vmul.f32 %v66, %v45
      %v69 = vadd.f32 %v67, %v68
      %70 = vst [vmem:[#allocation2] sm:$0xff] %v69
    $region17: #{_compositional_loss.1} parent=1 // pred_fallthru
      _
    %p71 = scmp.ne.s32.totalorder %s30, 0
    // Predicated region
    $region18: #{_compositional_loss.1} parent=1 // pred_check
      %p72 = pneg %p71
    $region19: #{_compositional_loss.1} parent=1 // pred_check_branch
      %74 = sbr.rel (%p72) target = $region21
    $region20: #{_compositional_loss.1} parent=1 // pred_region
      %v75 = vxor.u32 %v32, 2147483648
      %v76 = vmul.f32 %v75, 1.442695
      %v77 = vpow.pop %v76
      %v78 = vadd.f32 %v77, 1.0
      %v79 = vrcp.pop %v78
      %v80 = vmul.f32 1.0, %v79
      %vm81 = vcmp.eq.f32.partialorder %v33, 1.0
      %v82 = vsel %vm81, %v45, 0.0
      %vm83 = vcmp.eq.f32.partialorder %v33, 0.0
      %v84 = vsel %vm83, %v45, 0.0
      %v85 = vmul.f32 %v80, %v82
      %v86 = vmul.f32 %v80, %v84
      %s87 = scalar_lea.vmem [#allocation2], 8
      %v88 = vld [vmem:[%s87] sm:$0xff]
      %v89 = vadd.f32 %v88, %v82
      %90 = vst [vmem:[%s87] sm:$0xff] %v89
      %s91 = scalar_lea.vmem [#allocation2], 16
      %v92 = vld [vmem:[%s91] sm:$0xff]
      %v93 = vadd.f32 %v92, %v84
      %94 = vst [vmem:[%s91] sm:$0xff] %v93
      %s95 = scalar_lea.vmem [#allocation2], 24
      %v96 = vld [vmem:[%s95] sm:$0xff]
      %v97 = vadd.f32 %v96, %v85
      %98 = vst [vmem:[%s95] sm:$0xff] %v97
      %s99 = scalar_lea.vmem [#allocation2], 32
      %v100 = vld [vmem:[%s99] sm:$0xff]
      %v101 = vadd.f32 %v100, %v86
      %102 = vst [vmem:[%s99] sm:$0xff] %v101
      %s103 = scalar_lea.vmem [#allocation2], 40
      %v104 = vld [vmem:[%s103] sm:$0xff]
      %v105 = vmul.f32 %v80, %v85
      %v106 = vadd.f32 %v104, %v105
      %107 = vst [vmem:[%s103] sm:$0xff] %v106
      %s108 = scalar_lea.vmem [#allocation2], 48
      %v109 = vld [vmem:[%s108] sm:$0xff]
      %v110 = vmul.f32 %v80, %v86
      %v111 = vadd.f32 %v109, %v110
      %112 = vst [vmem:[%s108] sm:$0xff] %v111
    $region21: #{_compositional_loss.1} parent=1 // pred_fallthru
      _
    // Predicated region
    $region22: #{_compositional_loss.1} parent=1 // pred_check
      %p113 = pneg %p19
    $region23: #{_compositional_loss.1} parent=1 // pred_check_branch
      %115 = sbr.rel (%p113) target = $region25
    $region24: #{_compositional_loss.1} parent=1 // pred_region
      %v116 = vld [vmem:[#allocation2] sm:$0xff]
      %117 = vadd.xlane.f32.xlu0 %v116
      %v118 = vpop.xlane.xlu0 %117
      %v119 = vrot.slane %v118, 4
      %v120 = vadd.f32 %v118, %v119
      %v121 = vrot.slane %v120, 2
      %v122 = vadd.f32 %v120, %v121
      %v123 = vrot.slane %v122, 1
      %v124 = vadd.f32 %v122, %v123
      %s125 = vtos %v124
      %s126 = scalar_lea.smem [#allocation5], 0
      %127 = sst [smem:[%s126]] %s125
      %s128 = scalar_lea.vmem [#allocation2], 8
      %v129 = vld [vmem:[%s128] sm:$0xff]
      %130 = vadd.xlane.f32.xlu0 %v129
      %v131 = vpop.xlane.xlu0 %130
      %v132 = vrot.slane %v131, 4
      %v133 = vadd.f32 %v131, %v132
      %v134 = vrot.slane %v133, 2
      %v135 = vadd.f32 %v133, %v134
      %v136 = vrot.slane %v135, 1
      %v137 = vadd.f32 %v135, %v136
      %s138 = vtos %v137
      %s139 = scalar_lea.smem [#allocation5], 1
      %140 = sst [smem:[%s139]] %s138
      %s141 = scalar_lea.vmem [#allocation2], 16
      %v142 = vld [vmem:[%s141] sm:$0xff]
      %143 = vadd.xlane.f32.xlu0 %v142
      %v144 = vpop.xlane.xlu0 %143
      %v145 = vrot.slane %v144, 4
      %v146 = vadd.f32 %v144, %v145
      %v147 = vrot.slane %v146, 2
      %v148 = vadd.f32 %v146, %v147
      %v149 = vrot.slane %v148, 1
      %v150 = vadd.f32 %v148, %v149
      %s151 = vtos %v150
      %s152 = scalar_lea.smem [#allocation5], 2
      %153 = sst [smem:[%s152]] %s151
      %s154 = scalar_lea.vmem [#allocation2], 24
      %v155 = vld [vmem:[%s154] sm:$0xff]
      %156 = vadd.xlane.f32.xlu0 %v155
      %v157 = vpop.xlane.xlu0 %156
      %v158 = vrot.slane %v157, 4
      %v159 = vadd.f32 %v157, %v158
      %v160 = vrot.slane %v159, 2
      %v161 = vadd.f32 %v159, %v160
      %v162 = vrot.slane %v161, 1
      %v163 = vadd.f32 %v161, %v162
      %s164 = vtos %v163
      %s165 = scalar_lea.smem [#allocation5], 3
      %166 = sst [smem:[%s165]] %s164
      %s167 = scalar_lea.vmem [#allocation2], 32
      %v168 = vld [vmem:[%s167] sm:$0xff]
      %169 = vadd.xlane.f32.xlu0 %v168
      %v170 = vpop.xlane.xlu0 %169
      %v171 = vrot.slane %v170, 4
      %v172 = vadd.f32 %v170, %v171
      %v173 = vrot.slane %v172, 2
      %v174 = vadd.f32 %v172, %v173
      %v175 = vrot.slane %v174, 1
      %v176 = vadd.f32 %v174, %v175
      %s177 = vtos %v176
      %s178 = scalar_lea.smem [#allocation5], 4
      %179 = sst [smem:[%s178]] %s177
      %s180 = scalar_lea.vmem [#allocation2], 40
      %v181 = vld [vmem:[%s180] sm:$0xff]
      %182 = vadd.xlane.f32.xlu0 %v181
      %v183 = vpop.xlane.xlu0 %182
      %v184 = vrot.slane %v183, 4
      %v185 = vadd.f32 %v183, %v184
      %v186 = vrot.slane %v185, 2
      %v187 = vadd.f32 %v185, %v186
      %v188 = vrot.slane %v187, 1
      %v189 = vadd.f32 %v187, %v188
      %s190 = vtos %v189
      %s191 = scalar_lea.smem [#allocation5], 5
      %192 = sst [smem:[%s191]] %s190
      %s193 = scalar_lea.vmem [#allocation2], 48
      %v194 = vld [vmem:[%s193] sm:$0xff]
      %195 = vadd.xlane.f32.xlu0 %v194
      %v196 = vpop.xlane.xlu0 %195
      %v197 = vrot.slane %v196, 4
      %v198 = vadd.f32 %v196, %v197
      %v199 = vrot.slane %v198, 2
      %v200 = vadd.f32 %v198, %v199
      %v201 = vrot.slane %v200, 1
      %v202 = vadd.f32 %v200, %v201
      %s203 = vtos %v202
      %s204 = scalar_lea.smem [#allocation5], 6
      %205 = sst [smem:[%s204]] %s203
    $region25: #{_compositional_loss.1} parent=1 // pred_fallthru
      _
    // Predicated region
    $region26: #{_compositional_loss.1} parent=1 // pred_check
      _
    $region27: #{_compositional_loss.1} parent=1 // pred_check_branch
      %207 = sbr.rel (0) target = $region29
    $region28: #{_compositional_loss.1} parent=1 // pred_region
      %s209 = ssub.s32 16, 16
      %210 = vsyncadd [#allocation6], %s209
      %s212 = sshll.u32 %s3, 4
      %s213 = int_to_ptr.vmem [resolvable:$true] %s212
      %215 = dma.smem_to_vmem [#allocation5], 16, %s213, [#allocation6]
    $region29: #{_compositional_loss.1} parent=1 // pred_fallthru
      _
    // Predicated region
    $region30: #{_compositional_loss.1} parent=1 // pred_check
      _
    $region31: #{_compositional_loss.1} parent=1 // pred_check_branch
      %217 = sbr.rel (0) target = $region33
    $region32: #{_compositional_loss.1} parent=1 // pred_region
      %218 = dma.done [#allocation6], 16
    $region33: #{_compositional_loss.1} parent=1 // pred_fallthru
      _
    %219 = sfence
    %220 = vsyncpa [#allocation6], 1

</llo_original>
